<compile_context>
chip_gen: v7x
topology: tpu7x:2x2x1
jax: 0.10.0
libtpu: 0.0.40
codegen_flags: <defaults>
</compile_context>

<pallas_src>
import functools

import jax
import jax.numpy as jnp
from jax import lax
from jax.experimental import pallas as pl
from jax.experimental.pallas import tpu as pltpu

ALPHA = 0.2          # leaky_relu negative slope
OUT_FEATURES = 256   # hard-coded in the PyTorch module


def _gat_kernel(x_ref,        # (B_BLK, N_pad, E)     bf16
                wT_ref,       # (E, 256)              bf16
                bW_ref,       # (1, 256)              f32
                a1_ref,       # (256, 1)              bf16
                a2r_ref,      # (1, 256)              bf16
                mlpT_ref,     # (256, MLP_pad)        bf16  (pre-scaled by 1/N)
                mlpb_ref,     # (1, MLP_pad)          f32
                out_ref,      # (B_BLK, 1, MLP_pad)   f32
                *, n_real):
    b_blk, n_pad, e_dim = x_ref.shape
    mlp_pad = mlpT_ref.shape[1]
    x = x_ref[...].reshape(b_blk * n_pad, e_dim)          # layout-preserving (n_pad % 16 == 0)

    # Wh = self.W(sent_emb): one fused matmul for the whole batch block.
    # Cast to bf16 once; the same buffer feeds both downstream matmuls.
    wh = (jnp.dot(x, wT_ref[...], preferred_element_type=jnp.float32)
          + bW_ref[...]).astype(jnp.bfloat16)                         # (B*N, 256)
    wh3 = wh.reshape(b_blk, n_pad, OUT_FEATURES)                      # (B, N, 256)

    # e[b,i,j] = (Wh a1)[b,i] + (Wh a2)[b,j] as a VPU broadcast-add.
    # s1 lives on sublanes; s2 is produced directly on the lane axis with a
    # tiny batched matmul (M=1, K=256, N=n) -- no (N,N) K=2 matmul, no
    # transpose of Wh.
    s1 = jnp.dot(wh, a1_ref[...],
                 preferred_element_type=jnp.float32).reshape(b_blk, n_pad, 1)
    a2b = jnp.broadcast_to(a2r_ref[...].reshape(1, 1, OUT_FEATURES),
                           (b_blk, 1, OUT_FEATURES))
    s2 = lax.dot_general(a2b, wh3,
                         dimension_numbers=(((2,), (2,)), ((0,), (0,))),
                         preferred_element_type=jnp.float32)          # (B, 1, N)
    e = s1 + s2                                                       # (B, N, N)
    e = jnp.where(e > 0, e, ALPHA * e)                                # leaky_relu

    # Padded key columns must not receive softmax mass.
    if n_pad != n_real:
        key_idx = lax.broadcasted_iota(jnp.int32, (1, 1, n_pad), 2)
        e = jnp.where(key_idx < n_real, e, -1e30)

    # NOTE: the reference's event mask is a no-op (mask values are 0.1 / 0.9,
    # so torch.where(event_mask > 0, ...) always keeps e) -> plain softmax.
    m = jnp.max(e, axis=-1, keepdims=True)
    p = jnp.exp(e - m)
    inv_l = pl.reciprocal(jnp.sum(p, axis=-1, keepdims=True), approx=True)   # (B, N, 1)

    # Deferred normalization: matmul the un-normalized probabilities, then
    # scale the (B,N,256) result (N/256x less elementwise work than scaling
    # the (B,N,N) attention matrix and re-materializing it in bf16).
    h = jnp.einsum('bqk,bkd->bqd', p.astype(jnp.bfloat16), wh3,
                   preferred_element_type=jnp.float32)                # (B, N, 256)
    h = h * inv_l
    h = jnp.where(h > 0, h, jnp.exp(jnp.minimum(h, 0.0)) - 1.0)       # elu(alpha=1)

    # Average pooling over the real nodes (1/N folded into mlp_T) + final MLP.
    h_valid = h if n_pad == n_real else h[:, :n_real, :]
    pooled = jnp.sum(h_valid, axis=1)                                 # (B, 256)
    out = jnp.dot(pooled.astype(jnp.bfloat16), mlpT_ref[...],
                  preferred_element_type=jnp.float32) + mlpb_ref[...]
    out_ref[...] = out.reshape(b_blk, 1, mlp_pad)


def gat_forward(sent_emb, batch_e, params, *, block_b=8,
                vmem_limit_bytes=48 * 1024 * 1024):
    """sent_emb: (B, N, E) float; batch_e: (B, 4) int32 (unused: the event mask
    in the reference never masks anything, so it is dead code)."""
    del batch_e
    B, N, E = sent_emb.shape
    mlp_size = params["mlp_T"].shape[1]
    mlp_pad = ((mlp_size + 127) // 128) * 128           # lane-dense output slab

    # Batch blocking: keep >=2 grid steps so both TensorCores of a v7x chip
    # get work and the per-step (b_blk, N, N) intermediates stay inside the
    # scoped-VMEM budget (64 MiB physical on v7x, 16/32 MiB default on v5e/v6e).
    b_blk = max(1, min(block_b, B // 2 if B >= 2 else 1))
    b_pad = ((B + b_blk - 1) // b_blk) * b_blk

    # Pad the node axis to the bf16 sublane-packing multiple so in-kernel
    # reshapes are layout-preserving and softmax rows are full tiles.
    n_pad = ((N + 15) // 16) * 16

    x = sent_emb.astype(jnp.bfloat16)
    x = jnp.pad(x, ((0, b_pad - B), (0, n_pad - N), (0, 0)))

    wT = params["W_T"].astype(jnp.bfloat16)
    bW = params["b_W"].astype(jnp.float32)
    a1 = params["a1"].astype(jnp.bfloat16)                                  # (256, 1)
    a2r = params["a2"].reshape(1, OUT_FEATURES).astype(jnp.bfloat16)        # (1, 256)

    # Fold the 1/N average-pool scale into the MLP weight (wrapper-side
    # constant folding; removes a per-step VPU pass in the kernel).
    mlpT = params["mlp_T"] * (1.0 / N)
    mlpb = params["mlp_b"]
    if mlp_pad != mlp_size:
        mlpT = jnp.pad(mlpT, ((0, 0), (0, mlp_pad - mlp_size)))
        mlpb = jnp.pad(mlpb, ((0, 0), (0, mlp_pad - mlp_size)))
    mlpT = mlpT.astype(jnp.bfloat16)
    mlpb = mlpb.astype(jnp.float32)

    kernel = functools.partial(_gat_kernel, n_real=N)
    out = pl.pallas_call(
        kernel,
        grid=(b_pad // b_blk,),
        in_specs=[
            pl.BlockSpec((b_blk, n_pad, E), lambda b: (b, 0, 0)),            # sent_emb block
            pl.BlockSpec((E, OUT_FEATURES), lambda b: (0, 0)),               # W_T
            pl.BlockSpec((1, OUT_FEATURES), lambda b: (0, 0)),               # b_W
            pl.BlockSpec((OUT_FEATURES, 1), lambda b: (0, 0)),               # a1
            pl.BlockSpec((1, OUT_FEATURES), lambda b: (0, 0)),               # a2_row
            pl.BlockSpec((OUT_FEATURES, mlp_pad), lambda b: (0, 0)),         # mlp_T (scaled)
            pl.BlockSpec((1, mlp_pad), lambda b: (0, 0)),                    # mlp_b
        ],
        out_specs=pl.BlockSpec((b_blk, 1, mlp_pad), lambda b: (b, 0, 0)),
        out_shape=jax.ShapeDtypeStruct((b_pad, 1, mlp_pad), jnp.float32),
        compiler_params=pltpu.CompilerParams(
            dimension_semantics=("parallel",),
            vmem_limit_bytes=vmem_limit_bytes),
    )(x, wT, bW, a1, a2r, mlpT, mlpb)
    return out[:B, 0, :mlp_size]


def _xavier_uniform(key, shape):
    fan_out, fan_in = shape
    bound = (6.0 / (fan_in + fan_out)) ** 0.5
    return jax.random.uniform(key, shape, jnp.float32, -bound, bound)


def init_params(key, embed_size, mlp_size):
    k = jax.random.split(key, 5)
    W_w = _xavier_uniform(k[0], (OUT_FEATURES, embed_size))                    # W.weight
    W_b = jax.random.uniform(k[1], (OUT_FEATURES,), jnp.float32,
                             -1.0 / embed_size ** 0.5, 1.0 / embed_size ** 0.5)
    aT_w = _xavier_uniform(k[2], (1, 2 * OUT_FEATURES))                        # a_T.weight
    mlp_w = jax.random.uniform(k[3], (mlp_size, OUT_FEATURES), jnp.float32,
                               -1.0 / OUT_FEATURES ** 0.5, 1.0 / OUT_FEATURES ** 0.5)
    mlp_b = jax.random.uniform(k[4], (mlp_size,), jnp.float32,
                               -1.0 / OUT_FEATURES ** 0.5, 1.0 / OUT_FEATURES ** 0.5)
    return {
        "W_T": W_w.T,                                                          # (E, 256)
        "b_W": W_b.reshape(1, OUT_FEATURES),
        "a1": aT_w[0, :OUT_FEATURES].reshape(OUT_FEATURES, 1),
        "a2": aT_w[0, OUT_FEATURES:].reshape(OUT_FEATURES, 1),
        "mlp_T": mlp_w.T,                                                      # (256, MLP)
        "mlp_b": mlp_b.reshape(1, mlp_size),
    }


def gat_reference(sent_emb, batch_e, params):
    """Plain-JAX f32 reference mirroring the PyTorch forward."""
    del batch_e
    outs = []
    for i in range(sent_emb.shape[0]):
        x = sent_emb[i]
        Wh = x @ params["W_T"] + params["b_W"]
        e = Wh @ params["a1"] + (Wh @ params["a2"]).T
        e = jnp.where(e > 0, e, ALPHA * e)
        attn = jax.nn.softmax(e, axis=-1)       # event mask is a no-op (all > 0)
        h = attn @ Wh
        h = jnp.where(h > 0, h, jnp.exp(h) - 1.0)
        avg = jnp.mean(h, axis=0, keepdims=True)
        outs.append(avg @ params["mlp_T"] + params["mlp_b"])
    return jnp.concatenate(outs, axis=0)


if __name__ == "__main__":
    B, N, E, MLP = 2, 8, 32, 64
    key = jax.random.PRNGKey(0)
    k_emb, k_par = jax.random.split(key)

    sent_emb = jax.random.normal(k_emb, (B, N, E), jnp.float32)     # stand-in RoBERTa output
    batch_e = jnp.array([[1, 3, 4, 6],
                         [0, 2, 3, 5]], dtype=jnp.int32)            # (e1_start, e1_end, e2_start, e2_end)
    params = init_params(k_par, E, MLP)

    out = gat_forward(sent_emb, batch_e, params)
    out = jax.block_until_ready(out)

    ref = gat_reference(sent_emb, batch_e, params)
    assert out.shape == (B, MLP)
    assert bool(jnp.all(jnp.isfinite(out)))
    assert bool(jnp.max(jnp.abs(out - ref)) < 5e-2), "mismatch vs. reference"
    print("KERNEL_OK")
</pallas_src>

<mosaic_0001>
module attributes {stable_mosaic.version = 11 : i64} {
  func.func @_gat_kernel(%arg0: i32, %arg1: memref<1x16x32xbf16, #tpu.memory_space<vmem>>, %arg2: memref<32x256xbf16, #tpu.memory_space<vmem>>, %arg3: memref<1x256xf32, #tpu.memory_space<vmem>>, %arg4: memref<256x1xbf16, #tpu.memory_space<vmem>>, %arg5: memref<1x256xbf16, #tpu.memory_space<vmem>>, %arg6: memref<256x128xbf16, #tpu.memory_space<vmem>>, %arg7: memref<1x128xf32, #tpu.memory_space<vmem>>, %arg8: memref<1x1x128xf32, #tpu.memory_space<vmem>>) attributes {dimension_semantics = [#tpu.dimension_semantics<parallel>], iteration_bounds = array<i64: 2>, scalar_prefetch = 0 : i64, scratch_operands = 0 : i64, tpu.core_type = #tpu.core_type<tc>, window_params = [{transform_indices = @transform_0, window_bounds = array<i64: 1, 16, 32>}, {pipeline_mode = #tpu.pipeline_mode<synchronous>, transform_indices = @transform_1, window_bounds = array<i64: 32, 256>}, {pipeline_mode = #tpu.pipeline_mode<synchronous>, transform_indices = @transform_2, window_bounds = array<i64: 1, 256>}, {pipeline_mode = #tpu.pipeline_mode<synchronous>, transform_indices = @transform_3, window_bounds = array<i64: 256, 1>}, {pipeline_mode = #tpu.pipeline_mode<synchronous>, transform_indices = @transform_4, window_bounds = array<i64: 1, 256>}, {pipeline_mode = #tpu.pipeline_mode<synchronous>, transform_indices = @transform_5, window_bounds = array<i64: 256, 128>}, {pipeline_mode = #tpu.pipeline_mode<synchronous>, transform_indices = @transform_6, window_bounds = array<i64: 1, 128>}, {transform_indices = @transform_7, window_bounds = array<i64: 1, 1, 128>}]} {
    %c0 = arith.constant 0 : index
    %c0_0 = arith.constant 0 : index
    %c0_1 = arith.constant 0 : index
    %0 = vector.load %arg1[%c0, %c0_0, %c0_1] : memref<1x16x32xbf16, #tpu.memory_space<vmem>>, vector<1x16x32xbf16>
    %1 = vector.shape_cast %0 : vector<1x16x32xbf16> to vector<16x32xbf16>
    %c0_2 = arith.constant 0 : index
    %c0_3 = arith.constant 0 : index
    %2 = vector.load %arg2[%c0_2, %c0_3] : memref<32x256xbf16, #tpu.memory_space<vmem>>, vector<32x256xbf16>
    %cst = arith.constant dense<0.000000e+00> : vector<16x256xf32>
    %3 = tpu.matmul %1, %2, %cst {dimension_numbers = #tpu.dot_dimension_numbers<[1], [0], [0], [1], [0, 0, 1, 1], [], []>} : vector<16x32xbf16>, vector<32x256xbf16>, vector<16x256xf32> -> vector<16x256xf32>
    %c0_4 = arith.constant 0 : index
    %c0_5 = arith.constant 0 : index
    %4 = vector.load %arg3[%c0_4, %c0_5] : memref<1x256xf32, #tpu.memory_space<vmem>>, vector<1x256xf32>
    %5 = vector.broadcast %4 : vector<1x256xf32> to vector<16x256xf32>
    %6 = arith.addf %3, %5 : vector<16x256xf32>
    %7 = arith.truncf %6 : vector<16x256xf32> to vector<16x256xbf16>
    %8 = vector.shape_cast %7 : vector<16x256xbf16> to vector<1x16x256xbf16>
    %c0_6 = arith.constant 0 : index
    %c0_7 = arith.constant 0 : index
    %9 = vector.load %arg4[%c0_6, %c0_7] : memref<256x1xbf16, #tpu.memory_space<vmem>>, vector<256x1xbf16>
    %cst_8 = arith.constant dense<0.000000e+00> : vector<16x1xf32>
    %10 = tpu.matmul %7, %9, %cst_8 {dimension_numbers = #tpu.dot_dimension_numbers<[1], [0], [0], [1], [0, 0, 1, 1], [], []>} : vector<16x256xbf16>, vector<256x1xbf16>, vector<16x1xf32> -> vector<16x1xf32>
    %11 = vector.shape_cast %10 : vector<16x1xf32> to vector<1x16x1xf32>
    %c0_9 = arith.constant 0 : index
    %c0_10 = arith.constant 0 : index
    %12 = vector.load %arg5[%c0_9, %c0_10] : memref<1x256xbf16, #tpu.memory_space<vmem>>, vector<1x256xbf16>
    %13 = vector.shape_cast %12 : vector<1x256xbf16> to vector<1x1x256xbf16>
    %cst_11 = arith.constant dense<0.000000e+00> : vector<1x1x16xf32>
    %14 = tpu.matmul %13, %8, %cst_11 {dimension_numbers = #tpu.dot_dimension_numbers<[2], [2], [1], [1], [0, 0, 0, 1, 1, 1], [0], [0]>} : vector<1x1x256xbf16>, vector<1x16x256xbf16>, vector<1x1x16xf32> -> vector<1x1x16xf32>
    %15 = vector.broadcast %11 : vector<1x16x1xf32> to vector<1x16x16xf32>
    %16 = vector.broadcast %14 : vector<1x1x16xf32> to vector<1x16x16xf32>
    %17 = arith.addf %15, %16 : vector<1x16x16xf32>
    %cst_12 = arith.constant 0.000000e+00 : f32
    %18 = vector.broadcast %cst_12 : f32 to vector<1x16x16xf32>
    %19 = arith.cmpf ogt, %17, %18 : vector<1x16x16xf32>
    %cst_13 = arith.constant 2.000000e-01 : f32
    %20 = vector.broadcast %cst_13 : f32 to vector<1x16x16xf32>
    %21 = arith.mulf %20, %17 : vector<1x16x16xf32>
    %22 = arith.select %19, %17, %21 : vector<1x16x16xi1>, vector<1x16x16xf32>
    %23 = tpu.iota {dimensions = array<i32: 2>} : vector<1x1x16xi32>
    %c8_i32 = arith.constant 8 : i32
    %24 = vector.broadcast %c8_i32 : i32 to vector<1x1x16xi32>
    %25 = arith.cmpi slt, %23, %24 : vector<1x1x16xi32>
    %cst_14 = arith.constant -1.000000e+30 : f32
    %26 = vector.shape_cast %25 : vector<1x1x16xi1> to vector<1x1x16xi1>
    %27 = vector.broadcast %26 : vector<1x1x16xi1> to vector<1x16x16xi1>
    %28 = vector.broadcast %cst_14 : f32 to vector<1x16x16xf32>
    %29 = arith.select %27, %22, %28 : vector<1x16x16xi1>, vector<1x16x16xf32>
    %cst_15 = arith.constant dense<0xFF800000> : vector<1x16xf32>
    %30 = vector.multi_reduction <maximumf>, %29, %cst_15 [2] : vector<1x16x16xf32> to vector<1x16xf32>
    %31 = vector.shape_cast %30 : vector<1x16xf32> to vector<1x16x1xf32>
    %32 = vector.broadcast %31 : vector<1x16x1xf32> to vector<1x16x16xf32>
    %33 = arith.subf %29, %32 : vector<1x16x16xf32>
    %34 = math.exp %33 : vector<1x16x16xf32>
    %cst_16 = arith.constant dense<0.000000e+00> : vector<1x16xf32>
    %35 = vector.multi_reduction <add>, %34, %cst_16 [2] : vector<1x16x16xf32> to vector<1x16xf32>
    %36 = vector.shape_cast %35 : vector<1x16xf32> to vector<1x16x1xf32>
    %37 = tpu.reciprocal %36 {approx = true} : vector<1x16x1xf32> -> vector<1x16x1xf32>
    %38 = arith.truncf %34 : vector<1x16x16xf32> to vector<1x16x16xbf16>
    "tpu.trace_start"() <{level = 10 : i32, message = "bqk,bkd->bqd"}> : () -> ()
    %cst_17 = arith.constant dense<0.000000e+00> : vector<1x16x256xf32>
    %39 = tpu.matmul %38, %8, %cst_17 {dimension_numbers = #tpu.dot_dimension_numbers<[2], [1], [1], [2], [0, 0, 0, 1, 1, 2], [0], [0]>} : vector<1x16x16xbf16>, vector<1x16x256xbf16>, vector<1x16x256xf32> -> vector<1x16x256xf32>
    "tpu.trace_stop"() : () -> ()
    %40 = vector.broadcast %37 : vector<1x16x1xf32> to vector<1x16x256xf32>
    %41 = arith.mulf %39, %40 : vector<1x16x256xf32>
    %cst_18 = arith.constant 0.000000e+00 : f32
    %42 = vector.broadcast %cst_18 : f32 to vector<1x16x256xf32>
    %43 = arith.cmpf ogt, %41, %42 : vector<1x16x256xf32>
    %cst_19 = arith.constant 0.000000e+00 : f32
    %44 = vector.broadcast %cst_19 : f32 to vector<1x16x256xf32>
    %45 = arith.minimumf %41, %44 : vector<1x16x256xf32>
    %46 = math.exp %45 : vector<1x16x256xf32>
    %cst_20 = arith.constant 1.000000e+00 : f32
    %47 = vector.broadcast %cst_20 : f32 to vector<1x16x256xf32>
    %48 = arith.subf %46, %47 : vector<1x16x256xf32>
    %49 = arith.select %43, %41, %48 : vector<1x16x256xi1>, vector<1x16x256xf32>
    %50 = vector.extract_strided_slice %49 {offsets = [0, 0, 0], sizes = [1, 8, 256], strides = [1, 1, 1]} : vector<1x16x256xf32> to vector<1x8x256xf32>
    %cst_21 = arith.constant dense<0.000000e+00> : vector<1x256xf32>
    %51 = vector.multi_reduction <add>, %50, %cst_21 [1] : vector<1x8x256xf32> to vector<1x256xf32>
    %52 = arith.truncf %51 : vector<1x256xf32> to vector<1x256xbf16>
    %c0_22 = arith.constant 0 : index
    %c0_23 = arith.constant 0 : index
    %53 = vector.load %arg6[%c0_22, %c0_23] : memref<256x128xbf16, #tpu.memory_space<vmem>>, vector<256x128xbf16>
    %cst_24 = arith.constant dense<0.000000e+00> : vector<1x128xf32>
    %54 = tpu.matmul %52, %53, %cst_24 {dimension_numbers = #tpu.dot_dimension_numbers<[1], [0], [0], [1], [0, 0, 1, 1], [], []>} : vector<1x256xbf16>, vector<256x128xbf16>, vector<1x128xf32> -> vector<1x128xf32>
    %c0_25 = arith.constant 0 : index
    %c0_26 = arith.constant 0 : index
    %55 = vector.load %arg7[%c0_25, %c0_26] : memref<1x128xf32, #tpu.memory_space<vmem>>, vector<1x128xf32>
    %56 = arith.addf %54, %55 : vector<1x128xf32>
    %57 = vector.shape_cast %56 : vector<1x128xf32> to vector<1x1x128xf32>
    %c0_27 = arith.constant 0 : index
    %c0_28 = arith.constant 0 : index
    %c0_29 = arith.constant 0 : index
    %58 = vector.load %arg8[%c0_27, %c0_28, %c0_29] : memref<1x1x128xf32, #tpu.memory_space<vmem>>, vector<1x1x128xf32>
    tpu.vector_store %arg8[%c0_27, %c0_28, %c0_29], %57 {strides = array<i32>} : memref<1x1x128xf32, #tpu.memory_space<vmem>>, vector<1x1x128xf32>,
    return
  }
  func.func @transform_0(%arg0: i32) -> (i32, i32, i32) {
    %c0_i32 = arith.constant 0 : i32
    %c0_i32_0 = arith.constant 0 : i32
    %c0_i32_1 = arith.constant 0 : i32
    return %arg0, %c0_i32, %c0_i32_0 : i32, i32, i32
  }
  func.func @transform_1(%arg0: i32) -> (i32, i32) {
    %c0_i32 = arith.constant 0 : i32
    %c0_i32_0 = arith.constant 0 : i32
    %c0_i32_1 = arith.constant 0 : i32
    return %c0_i32, %c0_i32_0 : i32, i32
  }
  func.func @transform_2(%arg0: i32) -> (i32, i32) {
    %c0_i32 = arith.constant 0 : i32
    %c0_i32_0 = arith.constant 0 : i32
    %c0_i32_1 = arith.constant 0 : i32
    return %c0_i32, %c0_i32_0 : i32, i32
  }
  func.func @transform_3(%arg0: i32) -> (i32, i32) {
    %c0_i32 = arith.constant 0 : i32
    %c0_i32_0 = arith.constant 0 : i32
    %c0_i32_1 = arith.constant 0 : i32
    return %c0_i32, %c0_i32_0 : i32, i32
  }
  func.func @transform_4(%arg0: i32) -> (i32, i32) {
    %c0_i32 = arith.constant 0 : i32
    %c0_i32_0 = arith.constant 0 : i32
    %c0_i32_1 = arith.constant 0 : i32
    return %c0_i32, %c0_i32_0 : i32, i32
  }
  func.func @transform_5(%arg0: i32) -> (i32, i32) {
    %c0_i32 = arith.constant 0 : i32
    %c0_i32_0 = arith.constant 0 : i32
    %c0_i32_1 = arith.constant 0 : i32
    return %c0_i32, %c0_i32_0 : i32, i32
  }
  func.func @transform_6(%arg0: i32) -> (i32, i32) {
    %c0_i32 = arith.constant 0 : i32
    %c0_i32_0 = arith.constant 0 : i32
    %c0_i32_1 = arith.constant 0 : i32
    return %c0_i32, %c0_i32_0 : i32, i32
  }
  func.func @transform_7(%arg0: i32) -> (i32, i32, i32) {
    %c0_i32 = arith.constant 0 : i32
    %c0_i32_0 = arith.constant 0 : i32
    %c0_i32_1 = arith.constant 0 : i32
    return %arg0, %c0_i32, %c0_i32_0 : i32, i32, i32
  }
}

</mosaic_0001>

<llo_original>
// kernel: tpu_custom_call.1
$region0: #{tpu_custom_call.1}
  #allocation0 [shape = 'u32[]', space=smem, size = 0x4, offset = 0x4, fixed_abs, tag = 'smem constant byte address 0x4 - core index']
  #allocation1 [shape = 'u32[144,128]{1,0:T(1,128)}', space=vmem, size = 0x12000, scoped, tag = 'internal scratch']
  %s0 = inlined_call_operand.vmem [shape: bf16[2,16,32], index: 0, kind: input, shape index: {}]
  %s1 = inlined_call_operand.hbm [shape: bf16[32,256], index: 1, kind: input, shape index: {}]
  %s2 = inlined_call_operand.vmem [shape: f32[1,256], index: 2, kind: input, shape index: {}]
  %s3 = inlined_call_operand.vmem [shape: bf16[256,1], index: 3, kind: input, shape index: {}]
  %s4 = inlined_call_operand.vmem [shape: bf16[1,256], index: 4, kind: input, shape index: {}]
  %s5 = inlined_call_operand.vmem [shape: bf16[256,128], index: 5, kind: input, shape index: {}]
  %s6 = inlined_call_operand.vmem [shape: f32[1,128], index: 6, kind: input, shape index: {}]
  %s7 = inlined_call_operand.hbm [shape: f32[2,1,128], index: 7, kind: output, shape index: {}]
  %s8 = sld [smem:[#allocation0]]
  $region65: #{tpu_custom_call.1} parent=0
    _
  %s10 = ssub.s32 1, %s8
  %s11 = scalar_select 0, %s10, %s8
  $region1: #{tpu_custom_call.1} parent=0
    #allocation2 [shape = 'u8[16384]{0}', space=vmem, size = 0x4000, scoped, tag = 'input window, operand 1, single buffered']
    #allocation3 [shape = 's32[2]{0}', space=sflag, size = 0x8, scoped, tag = 'scoped memory for tpu_custom_call.1']
    #allocation4 [shape = 's32[2]{0}', space=sflag, size = 0x8, scoped, tag = 'scoped memory for tpu_custom_call.1']
    #allocation5 [shape = 'u8[1024]{0}', space=vmem, size = 0x400, scoped, tag = 'output window, operand 0']
    %12 = vsyncpa [#allocation3], 0
    %13 = vsyncpa [#allocation4], 0
    %s14 = scalar_lea.sflag [#allocation4], 1
    %15 = vsyncpa %s14, 0
    loop: start=0, step=1, limit=4
    $region2: #{tpu_custom_call.1} parent=1 // loop_pre_header
      _
    $region3: #{tpu_custom_call.1} parent=1 // loop_header
      %s17 = sphi 0, %s21
      %p18 = scmp.ge.s32.totalorder %s17, 4
      %s27 = sphi 0, %s29
      %s30 = sphi 0, %s27
      %s31 = sphi 0, %s30
      %s47 = sphi 0, %s31
      %s51 = sphi 0, %s51
      %s53 = sphi 0, %s51
      %s54 = sphi 0, %s53
      %s68 = sphi 0, %s54
      %s72 = sphi 0, %s72
      %s74 = sphi 0, %s72
      %s75 = sphi 0, %s74
      %s89 = sphi 0, %s75
      %s93 = sphi 0, %s93
      %s95 = sphi 0, %s93
      %s96 = sphi 0, %s95
      %s110 = sphi 0, %s96
      %s114 = sphi 0, %s114
      %s116 = sphi 0, %s114
      %s117 = sphi 0, %s116
      %s131 = sphi 0, %s117
      %s135 = sphi 0, %s135
      %s137 = sphi 0, %s135
      %s138 = sphi 0, %s137
      %s152 = sphi 0, %s138
      %s156 = sphi 0, %s156
      %s158 = sphi 0, %s156
      %s159 = sphi 0, %s158
      %s173 = sphi 0, %s159
      %s179 = sphi 0, %s181
      %s182 = sphi 0, %s179
      %s183 = sphi 0, %s182
      %s199 = sphi 0, %s183
    $region4: #{tpu_custom_call.1} parent=1 // loop_header_branch
      %20 = sbr.rel (%p18) target = $region8
    $region5: #{tpu_custom_call.1} parent=1 // loop_body
      %s22 = ssub.s32 %s17, 1
      %s23 = ssub.s32 %s17, 2
      %s24 = sadd.s32 %s17, 1
      %s25 = ssub.s32 %s17, %s24
      %p26 = scmp.eq.s32.totalorder %s25, 0
      %s28 = sadd.s32 %s27, 1
      %s29 = scalar_select %p26, %s27, %s28
      %p32 = pneg %p26
      %p33 = scmp.eq.s32.totalorder %s17, 1
      %p34 = por %p32, %p33
      %p35 = scmp.ne.s32.totalorder %s27, %s30
      %p36 = scmp.eq.s32.totalorder %s17, 0
      %p37 = por %p35, %p36
      %p38 = scmp.ne.s32.totalorder %s27, %s30
      %p39 = scmp.eq.s32.totalorder %s22, 1
      %p40 = por %p38, %p39
      %p41 = scmp.ne.s32.totalorder %s30, %s31
      %p42 = scmp.eq.s32.totalorder %s22, 0
      %p43 = por %p41, %p42
      %p44 = scmp.ne.s32.totalorder %s30, %s31
      %p45 = scmp.eq.s32.totalorder %s23, 1
      %p46 = por %p44, %p45
      %p48 = scmp.ne.s32.totalorder %s31, %s47
      %p49 = scmp.eq.s32.totalorder %s23, 0
      %p50 = por %p48, %p49
      %s52 = sadd.s32 %s51, 1
      %p55 = scmp.eq.s32.totalorder %s17, 1
      %p56 = scmp.ne.s32.totalorder %s51, %s53
      %p57 = scmp.eq.s32.totalorder %s17, 0
      %p58 = por %p56, %p57
      %p59 = scmp.ne.s32.totalorder %s51, %s53
      %p60 = scmp.eq.s32.totalorder %s22, 1
      %p61 = por %p59, %p60
      %p62 = scmp.ne.s32.totalorder %s53, %s54
      %p63 = scmp.eq.s32.totalorder %s22, 0
      %p64 = por %p62, %p63
      %p65 = scmp.ne.s32.totalorder %s53, %s54
      %p66 = scmp.eq.s32.totalorder %s23, 1
      %p67 = por %p65, %p66
      %p69 = scmp.ne.s32.totalorder %s54, %s68
      %p70 = scmp.eq.s32.totalorder %s23, 0
      %p71 = por %p69, %p70
      %s73 = sadd.s32 %s72, 1
      %p76 = scmp.eq.s32.totalorder %s17, 1
      %p77 = scmp.ne.s32.totalorder %s72, %s74
      %p78 = scmp.eq.s32.totalorder %s17, 0
      %p79 = por %p77, %p78
      %p80 = scmp.ne.s32.totalorder %s72, %s74
      %p81 = scmp.eq.s32.totalorder %s22, 1
      %p82 = por %p80, %p81
      %p83 = scmp.ne.s32.totalorder %s74, %s75
      %p84 = scmp.eq.s32.totalorder %s22, 0
      %p85 = por %p83, %p84
      %p86 = scmp.ne.s32.totalorder %s74, %s75
      %p87 = scmp.eq.s32.totalorder %s23, 1
      %p88 = por %p86, %p87
      %p90 = scmp.ne.s32.totalorder %s75, %s89
      %p91 = scmp.eq.s32.totalorder %s23, 0
      %p92 = por %p90, %p91
      %s94 = sadd.s32 %s93, 1
      %p97 = scmp.eq.s32.totalorder %s17, 1
      %p98 = scmp.ne.s32.totalorder %s93, %s95
      %p99 = scmp.eq.s32.totalorder %s17, 0
      %p100 = por %p98, %p99
      %p101 = scmp.ne.s32.totalorder %s93, %s95
      %p102 = scmp.eq.s32.totalorder %s22, 1
      %p103 = por %p101, %p102
      %p104 = scmp.ne.s32.totalorder %s95, %s96
      %p105 = scmp.eq.s32.totalorder %s22, 0
      %p106 = por %p104, %p105
      %p107 = scmp.ne.s32.totalorder %s95, %s96
      %p108 = scmp.eq.s32.totalorder %s23, 1
      %p109 = por %p107, %p108
      %p111 = scmp.ne.s32.totalorder %s96, %s110
      %p112 = scmp.eq.s32.totalorder %s23, 0
      %p113 = por %p111, %p112
      %s115 = sadd.s32 %s114, 1
      %p118 = scmp.eq.s32.totalorder %s17, 1
      %p119 = scmp.ne.s32.totalorder %s114, %s116
      %p120 = scmp.eq.s32.totalorder %s17, 0
      %p121 = por %p119, %p120
      %p122 = scmp.ne.s32.totalorder %s114, %s116
      %p123 = scmp.eq.s32.totalorder %s22, 1
      %p124 = por %p122, %p123
      %p125 = scmp.ne.s32.totalorder %s116, %s117
      %p126 = scmp.eq.s32.totalorder %s22, 0
      %p127 = por %p125, %p126
      %p128 = scmp.ne.s32.totalorder %s116, %s117
      %p129 = scmp.eq.s32.totalorder %s23, 1
      %p130 = por %p128, %p129
      %p132 = scmp.ne.s32.totalorder %s117, %s131
      %p133 = scmp.eq.s32.totalorder %s23, 0
      %p134 = por %p132, %p133
      %s136 = sadd.s32 %s135, 1
      %p139 = scmp.eq.s32.totalorder %s17, 1
      %p140 = scmp.ne.s32.totalorder %s135, %s137
      %p141 = scmp.eq.s32.totalorder %s17, 0
      %p142 = por %p140, %p141
      %p143 = scmp.ne.s32.totalorder %s135, %s137
      %p144 = scmp.eq.s32.totalorder %s22, 1
      %p145 = por %p143, %p144
      %p146 = scmp.ne.s32.totalorder %s137, %s138
      %p147 = scmp.eq.s32.totalorder %s22, 0
      %p148 = por %p146, %p147
      %p149 = scmp.ne.s32.totalorder %s137, %s138
      %p150 = scmp.eq.s32.totalorder %s23, 1
      %p151 = por %p149, %p150
      %p153 = scmp.ne.s32.totalorder %s138, %s152
      %p154 = scmp.eq.s32.totalorder %s23, 0
      %p155 = por %p153, %p154
      %s157 = sadd.s32 %s156, 1
      %p160 = scmp.eq.s32.totalorder %s17, 1
      %p161 = scmp.ne.s32.totalorder %s156, %s158
      %p162 = scmp.eq.s32.totalorder %s17, 0
      %p163 = por %p161, %p162
      %p164 = scmp.ne.s32.totalorder %s156, %s158
      %p165 = scmp.eq.s32.totalorder %s22, 1
      %p166 = por %p164, %p165
      %p167 = scmp.ne.s32.totalorder %s158, %s159
      %p168 = scmp.eq.s32.totalorder %s22, 0
      %p169 = por %p167, %p168
      %p170 = scmp.ne.s32.totalorder %s158, %s159
      %p171 = scmp.eq.s32.totalorder %s23, 1
      %p172 = por %p170, %p171
      %p174 = scmp.ne.s32.totalorder %s159, %s173
      %p175 = scmp.eq.s32.totalorder %s23, 0
      %p176 = por %p174, %p175
      %s177 = ssub.s32 %s17, %s24
      %p178 = scmp.eq.s32.totalorder %s177, 0
      %s180 = sadd.s32 %s179, 1
      %s181 = scalar_select %p178, %s179, %s180
      %p184 = pneg %p178
      %p185 = scmp.eq.s32.totalorder %s17, 1
      %p186 = por %p184, %p185
      %p187 = scmp.ne.s32.totalorder %s179, %s182
      %p188 = scmp.eq.s32.totalorder %s17, 0
      %p189 = por %p187, %p188
      %p190 = scmp.ne.s32.totalorder %s179, %s182
      %p191 = scmp.eq.s32.totalorder %s22, 1
      %p192 = por %p190, %p191
      %p193 = scmp.ne.s32.totalorder %s182, %s183
      %p194 = scmp.eq.s32.totalorder %s22, 0
      %p195 = por %p193, %p194
      %p196 = scmp.ne.s32.totalorder %s182, %s183
      %p197 = scmp.eq.s32.totalorder %s23, 1
      %p198 = por %p196, %p197
      %p200 = scmp.ne.s32.totalorder %s183, %s199
      %p201 = scmp.eq.s32.totalorder %s23, 0
      %p202 = por %p200, %p201
      %p203 = scmp.le.s32.totalorder 1, %s17
      %p204 = scmp.lt.s32.totalorder %s17, 3
      %p205 = pnand %p203, %p204
      %p206 = pneg %p205
      // Predicated region
      $region9: #{tpu_custom_call.1} parent=5 // pred_check
        _
      $region10: #{tpu_custom_call.1} parent=5 // pred_check_branch
        %208 = sbr.rel (%p205) target = $region12
      $region11: #{tpu_custom_call.1} parent=5 // pred_region
        %s209 = ssub.s32 %s17, 1
        // Predicated region
        $region13: #{tpu_custom_call.1} parent=11 // pred_check
          %p210 = pneg %p64
        $region14: #{tpu_custom_call.1} parent=11 // pred_check_branch
          %212 = sbr.rel (%p210) target = $region16
        $region15: #{tpu_custom_call.1} parent=11 // pred_region
          %s214 = ssub.s32 512, 512
          %215 = vsyncadd [#allocation3], %s214
          %s216 = sshll.u32 [#allocation2], 4
          %s217 = int_to_ptr.vmem [resolvable:$true] %s216
          %222 = dma.hbm_to_vmem [thread:$0]  %s1, 512, %s217, [#allocation3], 128, 128, 8
        $region16: #{tpu_custom_call.1} parent=11 // pred_fallthru
          _
        // Predicated region
        $region17: #{tpu_custom_call.1} parent=11 // pred_check
          %p223 = pneg %p85
        $region18: #{tpu_custom_call.1} parent=11 // pred_check_branch
          %225 = sbr.rel (%p223) target = $region20
        $region19: #{tpu_custom_call.1} parent=11 // pred_region
          _
        $region20: #{tpu_custom_call.1} parent=11 // pred_fallthru
          _
        // Predicated region
        $region21: #{tpu_custom_call.1} parent=11 // pred_check
          %p226 = pneg %p106
        $region22: #{tpu_custom_call.1} parent=11 // pred_check_branch
          %228 = sbr.rel (%p226) target = $region24
        $region23: #{tpu_custom_call.1} parent=11 // pred_region
          _
        $region24: #{tpu_custom_call.1} parent=11 // pred_fallthru
          _
        // Predicated region
        $region25: #{tpu_custom_call.1} parent=11 // pred_check
          %p229 = pneg %p127
        $region26: #{tpu_custom_call.1} parent=11 // pred_check_branch
          %231 = sbr.rel (%p229) target = $region28
        $region27: #{tpu_custom_call.1} parent=11 // pred_region
          _
        $region28: #{tpu_custom_call.1} parent=11 // pred_fallthru
          _
        // Predicated region
        $region29: #{tpu_custom_call.1} parent=11 // pred_check
          %p232 = pneg %p148
        $region30: #{tpu_custom_call.1} parent=11 // pred_check_branch
          %234 = sbr.rel (%p232) target = $region32
        $region31: #{tpu_custom_call.1} parent=11 // pred_region
          _
        $region32: #{tpu_custom_call.1} parent=11 // pred_fallthru
          _
        // Predicated region
        $region33: #{tpu_custom_call.1} parent=11 // pred_check
          %p235 = pneg %p169
        $region34: #{tpu_custom_call.1} parent=11 // pred_check_branch
          %237 = sbr.rel (%p235) target = $region36
        $region35: #{tpu_custom_call.1} parent=11 // pred_region
          _
        $region36: #{tpu_custom_call.1} parent=11 // pred_fallthru
          _
      $region12: #{tpu_custom_call.1} parent=5 // pred_fallthru
        _
      %p238 = scmp.lt.s32.totalorder %s17, 2
      // Predicated region
      $region37: #{tpu_custom_call.1} parent=5 // pred_check
        %p239 = pneg %p238
      $region38: #{tpu_custom_call.1} parent=5 // pred_check_branch
        %241 = sbr.rel (%p239) target = $region40
      $region39: #{tpu_custom_call.1} parent=5 // pred_region
        // Predicated region
        $region41: #{tpu_custom_call.1} parent=39 // pred_check
          %p242 = pneg %p37
        $region42: #{tpu_custom_call.1} parent=39 // pred_check_branch
          %244 = sbr.rel (%p242) target = $region44
        $region43: #{tpu_custom_call.1} parent=39 // pred_region
          %p245 = scmp.lt.s32.totalorder %s17, 1
          %s246 = scalar_select %p245, %s17, 1
          %s247 = smul.addr %s246, 2
          %s248 = smul.addr %s247, 4
          %s249 = scalar_lea.vmem %s0, %s248
        $region44: #{tpu_custom_call.1} parent=39 // pred_fallthru
          _
      $region40: #{tpu_custom_call.1} parent=5 // pred_fallthru
        _
      %p250 = scmp.le.s32.totalorder 1, %s17
      %p251 = scmp.lt.s32.totalorder %s17, 3
      %p252 = pnand %p250, %p251
      %p253 = pneg %p252
      // Predicated region
      $region45: #{tpu_custom_call.1} parent=5 // pred_check
        _
      $region46: #{tpu_custom_call.1} parent=5 // pred_check_branch
        %255 = sbr.rel (%p252) target = $region48
      $region47: #{tpu_custom_call.1} parent=5 // pred_region
        %s256 = ssub.s32 %s17, 1
        // Predicated region
        $region49: #{tpu_custom_call.1} parent=47 // pred_check
          %p257 = pneg %p64
        $region50: #{tpu_custom_call.1} parent=47 // pred_check_branch
          %259 = sbr.rel (%p257) target = $region52
        $region51: #{tpu_custom_call.1} parent=47 // pred_region
          %260 = dma.done [#allocation3], 512
        $region52: #{tpu_custom_call.1} parent=47 // pred_fallthru
          _
        %p261 = scmp.lt.s32.totalorder %s22, 1
        %s262 = scalar_select %p261, %s22, 1
        %s263 = smul.addr %s262, 2
        %s264 = smul.addr %s263, 4
        %s265 = scalar_lea.vmem %s0, %s264
        %p266 = pneg %p43
        %p267 = pneg %p40
        %p268 = pneg %p64
        %p269 = pneg %p61
        %p270 = pneg %p85
        %p271 = pneg %p82
        %p272 = pneg %p106
        %p273 = pneg %p103
        %p274 = pneg %p127
        %p275 = pneg %p124
        %p276 = pneg %p148
        %p277 = pneg %p145
        %p278 = pneg %p169
        %p279 = pneg %p166
        %p280 = pneg %p195
        %p281 = pneg %p192
        %s282 = sand.u32 %s182, 1
        %s283 = scalar_lea.sflag [#allocation4], %s282
        %s284 = sand.u32 %s182, 1
        %s285 = scalar_lea.vmem [#allocation5], %s284
        %p286 = scmp.lt.s32.totalorder %s22, 1
        %s287 = scalar_select %p286, %s22, 1
        %s288 = smul.addr %s287, 2
        %s289 = smul.addr %s288, 4
        %s290 = scalar_lea.vmem %s0, %s289
        %v292 = vld [vmem:[%s290] sm:$0xf]
        %v293 = vld [vmem:[%s290 + $0x4] sm:$0xf]
        %v294 = vld [vmem:[#allocation2] sm:$0xff]
        %v295 = vld [vmem:[#allocation2 + $0x8] sm:$0xff]
        %v296 = vld [vmem:[#allocation2 + $0x10] sm:$0xff]
        %v297 = vld [vmem:[#allocation2 + $0x18] sm:$0xff]
        %v298 = vld [vmem:[%s2] sm:$0x3]
        %v300 = vlaneseq
        %v301 = vshrl.u32 %v300, 7
        %v302 = vsub.s32 0, %v301
        %v303 = vrot.slane %v298, %v302
        %v304 = vlaneseq
        %v305 = vshrl.u32 %v304, 7
        %v306 = vsub.s32 1, %v305
        %v307 = vrot.slane %v298, %v306
        %v312 = vunpack.c.l.b16 %v292
        %v313 = vunpack.c.l.b16 %v293
        %v314 = vpack.c.b16 %v313, %v312
        %v319 = vunpack.c.l.b16 %v294
        %v320 = vunpack.c.h.b16 %v294
        %v321 = vunpack.c.l.b16 %v295
        %v322 = vunpack.c.h.b16 %v295
        %v323 = vunpack.c.l.b16 %v296
        %v324 = vunpack.c.h.b16 %v296
        %v325 = vunpack.c.l.b16 %v297
        %v326 = vunpack.c.h.b16 %v297
        %v327 = vpack.c.b16 %v321, %v319
        %v328 = vpack.c.b16 %v322, %v320
        %v329 = vpack.c.b16 %v325, %v323
        %v330 = vpack.c.b16 %v326, %v324
        %vm335 = vcmask 261120
        %v337 = vsel %vm335, %v314, 0
        %339 = vmatprep.subr.bf16.mxu0 %v328
        %340 = vmatpush1.bf16.msra.mxu0 %v327
        %341 = vmatprep.subr.bf16.mxu0 %v330
        %342 = vmatpush1.bf16.msra.mxu0 %v329
        %343 = vmatprep.subr.bf16.mxu0 0
        %344 = vmatpush1.bf16.msra.mxu0 0
        %345 = vmatprep.subr.bf16.mxu0 0
        %346 = vmatpush1.bf16.msra.mxu0 0
        %347 = vmatprep.subr.bf16.mxu0 0
        %348 = vmatpush1.bf16.msra.mxu0 0
        %349 = vmatprep.subr.bf16.mxu0 0
        %350 = vmatpush1.bf16.msra.mxu0 0
        %351 = vmatprep.subr.bf16.mxu0 0
        %352 = vmatpush1.bf16.msra.mxu0 0
        %353 = vmatprep.subr.bf16.mxu0 0
        %354 = vmatpush1.bf16.msra.mxu0 0
        %355 = vmatprep.subr.bf16.mxu0 0
        %356 = vmatpush1.bf16.msra.mxu0 0
        %357 = vmatprep.subr.bf16.mxu0 0
        %358 = vmatpush1.bf16.msra.mxu0 0
        %359 = vmatprep.subr.bf16.mxu0 0
        %360 = vmatpush1.bf16.msra.mxu0 0
        %361 = vmatprep.subr.bf16.mxu0 0
        %362 = vmatpush1.bf16.msra.mxu0 0
        %363 = vmatprep.subr.bf16.mxu0 0
        %364 = vmatpush1.bf16.msra.mxu0 0
        %365 = vmatprep.subr.bf16.mxu0 0
        %366 = vmatpush1.bf16.msra.mxu0 0
        %367 = vmatprep.subr.bf16.mxu0 0
        %368 = vmatpush1.bf16.msra.mxu0 0
        %369 = vmatprep.subr.bf16.mxu0 0
        %370 = vmatpush1.bf16.msra.mxu0 0
        %371 = vmatprep.mubr.bf16.mxu0 0
        %372 = vmatmul.mubr.bf16.gmra.mrb[0].mxu0 %v337
        %v373 = vpop.f32.mrb[0].mxu0
        %v374 = vadd.f32 %v303, %v373
        %v375 = vpop.f32.mrb[0].mxu0
        %v376 = vadd.f32 %v307, %v375
        %v377 = vpop.f32.mrb[0].mxu0
        %v378 = vadd.f32 %v303, %v377
        %v379 = vpop.f32.mrb[0].mxu0
        %v380 = vadd.f32 %v307, %v379
        %381 = vdwg.mxu0
        %v382 = vpack.c.bf16 %v378, %v374
        %v383 = vpack.c.bf16 %v380, %v376
        %v384 = vld [vmem:[%s3] sm:$0xf]
        %v385 = vld [vmem:[%s3 + $0x4] sm:$0xf]
        %v386 = vld [vmem:[%s3 + $0x8] sm:$0xf]
        %v387 = vld [vmem:[%s3 + $0xc] sm:$0xf]
        %v388 = vld [vmem:[%s3 + $0x10] sm:$0xf]
        %v389 = vld [vmem:[%s3 + $0x14] sm:$0xf]
        %v390 = vld [vmem:[%s3 + $0x18] sm:$0xf]
        %v391 = vld [vmem:[%s3 + $0x1c] sm:$0xf]
        %v392 = vld [vmem:[%s3 + $0x20] sm:$0xf]
        %v393 = vld [vmem:[%s3 + $0x24] sm:$0xf]
        %v394 = vld [vmem:[%s3 + $0x28] sm:$0xf]
        %v395 = vld [vmem:[%s3 + $0x2c] sm:$0xf]
        %v396 = vld [vmem:[%s3 + $0x30] sm:$0xf]
        %v397 = vld [vmem:[%s3 + $0x34] sm:$0xf]
        %v398 = vld [vmem:[%s3 + $0x38] sm:$0xf]
        %v399 = vld [vmem:[%s3 + $0x3c] sm:$0xf]
        %v400 = vld [vmem:[%s3 + $0x40] sm:$0xf]
        %v401 = vld [vmem:[%s3 + $0x44] sm:$0xf]
        %v402 = vld [vmem:[%s3 + $0x48] sm:$0xf]
        %v403 = vld [vmem:[%s3 + $0x4c] sm:$0xf]
        %v404 = vld [vmem:[%s3 + $0x50] sm:$0xf]
        %v405 = vld [vmem:[%s3 + $0x54] sm:$0xf]
        %v406 = vld [vmem:[%s3 + $0x58] sm:$0xf]
        %v407 = vld [vmem:[%s3 + $0x5c] sm:$0xf]
        %v408 = vld [vmem:[%s3 + $0x60] sm:$0xf]
        %v409 = vld [vmem:[%s3 + $0x64] sm:$0xf]
        %v410 = vld [vmem:[%s3 + $0x68] sm:$0xf]
        %v411 = vld [vmem:[%s3 + $0x6c] sm:$0xf]
        %v412 = vld [vmem:[%s3 + $0x70] sm:$0xf]
        %v413 = vld [vmem:[%s3 + $0x74] sm:$0xf]
        %v414 = vld [vmem:[%s3 + $0x78] sm:$0xf]
        %v415 = vld [vmem:[%s3 + $0x7c] sm:$0xf]
        %v448 = vunpack.c.l.b16 %v384
        %v449 = vunpack.c.l.b16 %v385
        %v450 = vunpack.c.l.b16 %v386
        %v451 = vunpack.c.l.b16 %v387
        %v452 = vunpack.c.l.b16 %v388
        %v453 = vunpack.c.l.b16 %v389
        %v454 = vunpack.c.l.b16 %v390
        %v455 = vunpack.c.l.b16 %v391
        %v456 = vunpack.c.l.b16 %v392
        %v457 = vunpack.c.l.b16 %v393
        %v458 = vunpack.c.l.b16 %v394
        %v459 = vunpack.c.l.b16 %v395
        %v460 = vunpack.c.l.b16 %v396
        %v461 = vunpack.c.l.b16 %v397
        %v462 = vunpack.c.l.b16 %v398
        %v463 = vunpack.c.l.b16 %v399
        %v464 = vunpack.c.l.b16 %v400
        %v465 = vunpack.c.l.b16 %v401
        %v466 = vunpack.c.l.b16 %v402
        %v467 = vunpack.c.l.b16 %v403
        %v468 = vunpack.c.l.b16 %v404
        %v469 = vunpack.c.l.b16 %v405
        %v470 = vunpack.c.l.b16 %v406
        %v471 = vunpack.c.l.b16 %v407
        %v472 = vunpack.c.l.b16 %v408
        %v473 = vunpack.c.l.b16 %v409
        %v474 = vunpack.c.l.b16 %v410
        %v475 = vunpack.c.l.b16 %v411
        %v476 = vunpack.c.l.b16 %v412
        %v477 = vunpack.c.l.b16 %v413
        %v478 = vunpack.c.l.b16 %v414
        %v479 = vunpack.c.l.b16 %v415
        %v480 = vpack.c.b16 %v449, %v448
        %v481 = vpack.c.b16 %v451, %v450
        %v482 = vpack.c.b16 %v453, %v452
        %v483 = vpack.c.b16 %v455, %v454
        %v484 = vpack.c.b16 %v457, %v456
        %v485 = vpack.c.b16 %v459, %v458
        %v486 = vpack.c.b16 %v461, %v460
        %v487 = vpack.c.b16 %v463, %v462
        %v488 = vpack.c.b16 %v465, %v464
        %v489 = vpack.c.b16 %v467, %v466
        %v490 = vpack.c.b16 %v469, %v468
        %v491 = vpack.c.b16 %v471, %v470
        %v492 = vpack.c.b16 %v473, %v472
        %v493 = vpack.c.b16 %v475, %v474
        %v494 = vpack.c.b16 %v477, %v476
        %v495 = vpack.c.b16 %v479, %v478
        %512 = vmatprep.subr.bf16.mxu0 0
        %513 = vmatpush1.bf16.msra.mxu0 %v480
        %514 = vmatprep.subr.bf16.mxu0 0
        %515 = vmatpush1.bf16.msra.mxu0 %v481
        %516 = vmatprep.subr.bf16.mxu0 0
        %517 = vmatpush1.bf16.msra.mxu0 %v482
        %518 = vmatprep.subr.bf16.mxu0 0
        %519 = vmatpush1.bf16.msra.mxu0 %v483
        %520 = vmatprep.subr.bf16.mxu0 0
        %521 = vmatpush1.bf16.msra.mxu0 %v484
        %522 = vmatprep.subr.bf16.mxu0 0
        %523 = vmatpush1.bf16.msra.mxu0 %v485
        %524 = vmatprep.subr.bf16.mxu0 0
        %525 = vmatpush1.bf16.msra.mxu0 %v486
        %526 = vmatprep.subr.bf16.mxu0 0
        %527 = vmatpush1.bf16.msra.mxu0 %v487
        %528 = vmatprep.subr.bf16.mxu0 0
        %529 = vmatpush1.bf16.msra.mxu0 %v488
        %530 = vmatprep.subr.bf16.mxu0 0
        %531 = vmatpush1.bf16.msra.mxu0 %v489
        %532 = vmatprep.subr.bf16.mxu0 0
        %533 = vmatpush1.bf16.msra.mxu0 %v490
        %534 = vmatprep.subr.bf16.mxu0 0
        %535 = vmatpush1.bf16.msra.mxu0 %v491
        %536 = vmatprep.subr.bf16.mxu0 0
        %537 = vmatpush1.bf16.msra.mxu0 %v492
        %538 = vmatprep.subr.bf16.mxu0 0
        %539 = vmatpush1.bf16.msra.mxu0 %v493
        %540 = vmatprep.subr.bf16.mxu0 0
        %541 = vmatpush1.bf16.msra.mxu0 %v494
        %542 = vmatprep.subr.bf16.mxu0 0
        %543 = vmatpush1.bf16.msra.mxu0 %v495
        %544 = vmatprep.mubr.bf16.mxu0 %v383
        %545 = vmatmul.mubr.bf16.gmra.mrb[0].mxu0 %v382
        %v546 = vpop.f32.mrb[0].mxu0
        %v547 = vadd.f32 0.0, %v546
        %v548 = vpop.f32.mrb[0].mxu0
        %v549 = vpop.f32.mrb[0].mxu0
        %v550 = vadd.f32 0.0, %v549
        %v551 = vpop.f32.mrb[0].mxu0
        %552 = vdwg.mxu0
        %v553 = vld [vmem:[%s4] sm:$0x3]
        %v556 = vunpack.c.l.s4 1966171168
        %v557 = vunpack.c.0.s8 %v556
        %v558 = vlaneseq
        %v559 = vshrl.u32 %v558, 7
        %v560 = vsub.s32 %v557, %v559
        %v561 = vrot.slane %v553, %v560
        %v562 = vcombine.high %v561, %v561
        %v564 = vunpack.c.l.s4 1966171168
        %v565 = vunpack.c.0.s8 %v564
        %v566 = vlaneseq
        %v567 = vshrl.u32 %v566, 7
        %v568 = vsub.s32 %v565, %v567
        %v569 = vrot.slane %v561, %v568
        %v571 = vunpack.c.l.s4 1966171168
        %v572 = vunpack.c.0.s8 %v571
        %v573 = vlaneseq
        %v574 = vshrl.u32 %v573, 7
        %v575 = vsub.s32 %v572, %v574
        %v576 = vrot.slane %v562, %v575
        %579 = vmatprep.subr.bf16.mxu0 %v383
        %580 = vmatpush1.bf16.xpose.msra.mxu0 %v382
        %581 = vmatprep.subr.bf16.mxu0 0
        %582 = vmatpush1.bf16.xpose.msra.mxu0 0
        %583 = vmatprep.subr.bf16.mxu0 0
        %584 = vmatpush1.bf16.xpose.msra.mxu0 0
        %585 = vmatprep.subr.bf16.mxu0 0
        %586 = vmatpush1.bf16.xpose.msra.mxu0 0
        %587 = vmatprep.subr.bf16.mxu0 0
        %588 = vmatpush1.bf16.xpose.msra.mxu0 0
        %589 = vmatprep.subr.bf16.mxu0 0
        %590 = vmatpush1.bf16.xpose.msra.mxu0 0
        %591 = vmatprep.subr.bf16.mxu0 0
        %592 = vmatpush1.bf16.xpose.msra.mxu0 0
        %593 = vmatprep.subr.bf16.mxu0 0
        %594 = vmatpush1.bf16.xpose.msra.mxu0 0
        %595 = vmatprep.subr.bf16.mxu0 0
        %596 = vmatpush1.bf16.xpose.msra.mxu0 0
        %597 = vmatprep.subr.bf16.mxu0 0
        %598 = vmatpush1.bf16.xpose.msra.mxu0 0
        %599 = vmatprep.subr.bf16.mxu0 0
        %600 = vmatpush1.bf16.xpose.msra.mxu0 0
        %601 = vmatprep.subr.bf16.mxu0 0
        %602 = vmatpush1.bf16.xpose.msra.mxu0 0
        %603 = vmatprep.subr.bf16.mxu0 0
        %604 = vmatpush1.bf16.xpose.msra.mxu0 0
        %605 = vmatprep.subr.bf16.mxu0 0
        %606 = vmatpush1.bf16.xpose.msra.mxu0 0
        %607 = vmatprep.subr.bf16.mxu0 0
        %608 = vmatpush1.bf16.xpose.msra.mxu0 0
        %609 = vmatprep.subr.bf16.mxu0 0
        %610 = vmatpush1.bf16.xpose.msra.mxu0 0
        %611 = vmatprep.mubr.bf16.mxu0 %v576
        %612 = vmatmul.mubr.bf16.gmra.mrb[0].mxu0 %v569
        %v613 = vpop.f32.mrb[0].mxu0
        %v614 = vadd.f32 0.0, %v613
        %v615 = vpop.f32.mrb[0].mxu0
        %v616 = vpop.f32.mrb[0].mxu0
        %v617 = vpop.f32.mrb[0].mxu0
        %618 = vdwg.mxu0
        %620 = vset.pattern.permute.xlu0 0
        %621 = vperm.xlu0 %620, %v547
        %v622 = vpop.permute.xlu0 %621
        %625 = vset.pattern.permute.xlu0 0
        %626 = vperm.xlu0 %625, %v550
        %v627 = vpop.permute.xlu0 %626
        %v629 = vlaneseq
        %v630 = vshrl.u32 %v629, 7
        %v631 = vsub.s32 0, %v630
        %v632 = vrot.slane %v614, %v631
        %v633 = vadd.f32 %v622, %v632
        %v634 = vadd.f32 %v627, %v632
        %vm635 = vcmp.gt.f32.partialorder %v633, 0.0
        %vm636 = vcmp.gt.f32.partialorder %v634, 0.0
        %v637 = vmul.f32 %v633, 0.2
        %v638 = vmul.f32 %v634, 0.2
        %v639 = vsel %vm635, %v633, %v637
        %v640 = vsel %vm636, %v634, %v638
        %v641 = vlaneseq
        %v642 = vand.u32 %v641, 127
        %vm643 = vcmp.lt.s32.totalorder %v642, 8
        %v644 = vsel %vm643, 1, 0
        %vm645 = vcmp.eq.s32.totalorder %v644, 1
        %v646 = vsel %vm645, %v639, -1e+30
        %v647 = vsel %vm645, %v640, -1e+30
        %vm648 = vcmask 130048
        %v649 = vsel %vm648, %v646, -inf
        %650 = vmax.xlane.f32.xlu0 %v649
        %v651 = vpop.xlane.xlu0 %650
        %v652 = vsel %vm648, %v647, -inf
        %653 = vmax.xlane.f32.xlu0 %v652
        %v654 = vpop.xlane.xlu0 %653
        %v655 = vsub.f32 %v646, %v651
        %v656 = vsub.f32 %v647, %v654
        %v657 = vmul.f32 %v655, 1.442695
        %v658 = vpow.pop %v657
        %v659 = vmul.f32 %v656, 1.442695
        %v660 = vpow.pop %v659
        %v661 = vsel %vm648, %v658, 0.0
        %662 = vadd.xlane.f32.xlu0 %v661
        %v663 = vpop.xlane.xlu0 %662
        %v664 = vrcp.pop %v663
        %v665 = vpack.c.bf16 %v660, %v658
        %v667 = vsel %vm648, %v665, 0
        %669 = vmatprep.subr.bf16.mxu0 %v383
        %670 = vmatpush1.bf16.msra.mxu0 %v382
        %671 = vmatprep.subr.bf16.mxu0 0
        %672 = vmatpush1.bf16.msra.mxu0 0
        %673 = vmatprep.subr.bf16.mxu0 0
        %674 = vmatpush1.bf16.msra.mxu0 0
        %675 = vmatprep.subr.bf16.mxu0 0
        %676 = vmatpush1.bf16.msra.mxu0 0
        %677 = vmatprep.subr.bf16.mxu0 0
        %678 = vmatpush1.bf16.msra.mxu0 0
        %679 = vmatprep.subr.bf16.mxu0 0
        %680 = vmatpush1.bf16.msra.mxu0 0
        %681 = vmatprep.subr.bf16.mxu0 0
        %682 = vmatpush1.bf16.msra.mxu0 0
        %683 = vmatprep.subr.bf16.mxu0 0
        %684 = vmatpush1.bf16.msra.mxu0 0
        %685 = vmatprep.subr.bf16.mxu0 0
        %686 = vmatpush1.bf16.msra.mxu0 0
        %687 = vmatprep.subr.bf16.mxu0 0
        %688 = vmatpush1.bf16.msra.mxu0 0
        %689 = vmatprep.subr.bf16.mxu0 0
        %690 = vmatpush1.bf16.msra.mxu0 0
        %691 = vmatprep.subr.bf16.mxu0 0
        %692 = vmatpush1.bf16.msra.mxu0 0
        %693 = vmatprep.subr.bf16.mxu0 0
        %694 = vmatpush1.bf16.msra.mxu0 0
        %695 = vmatprep.subr.bf16.mxu0 0
        %696 = vmatpush1.bf16.msra.mxu0 0
        %697 = vmatprep.subr.bf16.mxu0 0
        %698 = vmatpush1.bf16.msra.mxu0 0
        %699 = vmatprep.subr.bf16.mxu0 0
        %700 = vmatpush1.bf16.msra.mxu0 0
        %701 = vmatprep.mubr.bf16.mxu0 0
        %702 = vmatmul.mubr.bf16.gmra.mrb[0].mxu0 %v667
        %v703 = vpop.f32.mrb[0].mxu0
        %v704 = vadd.f32 0.0, %v703
        %v705 = vpop.f32.mrb[0].mxu0
        %v706 = vadd.f32 0.0, %v705
        %v707 = vpop.f32.mrb[0].mxu0
        %v708 = vpop.f32.mrb[0].mxu0
        %709 = vdwg.mxu0
        %v710 = vmul.f32 %v704, %v664
        %v711 = vmul.f32 %v706, %v664
        %vm712 = vcmp.gt.f32.partialorder %v710, 0.0
        %vm713 = vcmp.gt.f32.partialorder %v711, 0.0
        %v714 = vmin.f32 %v710, 0.0
        %v715 = vmin.f32 %v711, 0.0
        %v716 = vmul.f32 %v714, 1.442695
        %v717 = vpow.pop %v716
        %v718 = vmul.f32 %v715, 1.442695
        %v719 = vpow.pop %v718
        %v720 = vsub.f32 %v717, 1.0
        %v721 = vsub.f32 %v719, 1.0
        %v722 = vsel %vm712, %v710, %v720
        %v723 = vsel %vm713, %v711, %v721
        %v724 = vrot.slane %v722, 4
        %v725 = vadd.f32 %v722, %v724
        %v726 = vrot.slane %v725, 2
        %v727 = vadd.f32 %v725, %v726
        %v728 = vrot.slane %v727, 1
        %v729 = vadd.f32 %v727, %v728
        %v730 = vrot.slane %v723, 4
        %v731 = vadd.f32 %v723, %v730
        %v732 = vrot.slane %v731, 2
        %v733 = vadd.f32 %v731, %v732
        %v734 = vrot.slane %v733, 1
        %v735 = vadd.f32 %v733, %v734
        %v736 = vpack.c.bf16 %v729, %v729
        %v737 = vpack.c.bf16 %v735, %v735
        %v738 = vld [vmem:[%s5] sm:$0xf]
        %v739 = vld [vmem:[%s5 + $0x4] sm:$0xf]
        %v740 = vld [vmem:[%s5 + $0x8] sm:$0xf]
        %v741 = vld [vmem:[%s5 + $0xc] sm:$0xf]
        %v742 = vld [vmem:[%s5 + $0x10] sm:$0xf]
        %v743 = vld [vmem:[%s5 + $0x14] sm:$0xf]
        %v744 = vld [vmem:[%s5 + $0x18] sm:$0xf]
        %v745 = vld [vmem:[%s5 + $0x1c] sm:$0xf]
        %v746 = vld [vmem:[%s5 + $0x20] sm:$0xf]
        %v747 = vld [vmem:[%s5 + $0x24] sm:$0xf]
        %v748 = vld [vmem:[%s5 + $0x28] sm:$0xf]
        %v749 = vld [vmem:[%s5 + $0x2c] sm:$0xf]
        %v750 = vld [vmem:[%s5 + $0x30] sm:$0xf]
        %v751 = vld [vmem:[%s5 + $0x34] sm:$0xf]
        %v752 = vld [vmem:[%s5 + $0x38] sm:$0xf]
        %v753 = vld [vmem:[%s5 + $0x3c] sm:$0xf]
        %v754 = vld [vmem:[%s5 + $0x40] sm:$0xf]
        %v755 = vld [vmem:[%s5 + $0x44] sm:$0xf]
        %v756 = vld [vmem:[%s5 + $0x48] sm:$0xf]
        %v757 = vld [vmem:[%s5 + $0x4c] sm:$0xf]
        %v758 = vld [vmem:[%s5 + $0x50] sm:$0xf]
        %v759 = vld [vmem:[%s5 + $0x54] sm:$0xf]
        %v760 = vld [vmem:[%s5 + $0x58] sm:$0xf]
        %v761 = vld [vmem:[%s5 + $0x5c] sm:$0xf]
        %v762 = vld [vmem:[%s5 + $0x60] sm:$0xf]
        %v763 = vld [vmem:[%s5 + $0x64] sm:$0xf]
        %v764 = vld [vmem:[%s5 + $0x68] sm:$0xf]
        %v765 = vld [vmem:[%s5 + $0x6c] sm:$0xf]
        %v766 = vld [vmem:[%s5 + $0x70] sm:$0xf]
        %v767 = vld [vmem:[%s5 + $0x74] sm:$0xf]
        %v768 = vld [vmem:[%s5 + $0x78] sm:$0xf]
        %v769 = vld [vmem:[%s5 + $0x7c] sm:$0xf]
        %v770 = vld [vmem:[%s6] sm:$0x1]
        %v803 = vunpack.c.l.b16 %v738
        %v804 = vunpack.c.l.b16 %v739
        %v805 = vunpack.c.l.b16 %v740
        %v806 = vunpack.c.l.b16 %v741
        %v807 = vunpack.c.l.b16 %v742
        %v808 = vunpack.c.l.b16 %v743
        %v809 = vunpack.c.l.b16 %v744
        %v810 = vunpack.c.l.b16 %v745
        %v811 = vunpack.c.l.b16 %v746
        %v812 = vunpack.c.l.b16 %v747
        %v813 = vunpack.c.l.b16 %v748
        %v814 = vunpack.c.l.b16 %v749
        %v815 = vunpack.c.l.b16 %v750
        %v816 = vunpack.c.l.b16 %v751
        %v817 = vunpack.c.l.b16 %v752
        %v818 = vunpack.c.l.b16 %v753
        %v819 = vunpack.c.l.b16 %v754
        %v820 = vunpack.c.l.b16 %v755
        %v821 = vunpack.c.l.b16 %v756
        %v822 = vunpack.c.l.b16 %v757
        %v823 = vunpack.c.l.b16 %v758
        %v824 = vunpack.c.l.b16 %v759
        %v825 = vunpack.c.l.b16 %v760
        %v826 = vunpack.c.l.b16 %v761
        %v827 = vunpack.c.l.b16 %v762
        %v828 = vunpack.c.l.b16 %v763
        %v829 = vunpack.c.l.b16 %v764
        %v830 = vunpack.c.l.b16 %v765
        %v831 = vunpack.c.l.b16 %v766
        %v832 = vunpack.c.l.b16 %v767
        %v833 = vunpack.c.l.b16 %v768
        %v834 = vunpack.c.l.b16 %v769
        %v835 = vpack.c.b16 %v804, %v803
        %v836 = vpack.c.b16 %v806, %v805
        %v837 = vpack.c.b16 %v808, %v807
        %v838 = vpack.c.b16 %v810, %v809
        %v839 = vpack.c.b16 %v812, %v811
        %v840 = vpack.c.b16 %v814, %v813
        %v841 = vpack.c.b16 %v816, %v815
        %v842 = vpack.c.b16 %v818, %v817
        %v843 = vpack.c.b16 %v820, %v819
        %v844 = vpack.c.b16 %v822, %v821
        %v845 = vpack.c.b16 %v824, %v823
        %v846 = vpack.c.b16 %v826, %v825
        %v847 = vpack.c.b16 %v828, %v827
        %v848 = vpack.c.b16 %v830, %v829
        %v849 = vpack.c.b16 %v832, %v831
        %v850 = vpack.c.b16 %v834, %v833
        %867 = vmatprep.subr.bf16.mxu0 0
        %868 = vmatpush1.bf16.msra.mxu0 %v835
        %869 = vmatprep.subr.bf16.mxu0 0
        %870 = vmatpush1.bf16.msra.mxu0 %v836
        %871 = vmatprep.subr.bf16.mxu0 0
        %872 = vmatpush1.bf16.msra.mxu0 %v837
        %873 = vmatprep.subr.bf16.mxu0 0
        %874 = vmatpush1.bf16.msra.mxu0 %v838
        %875 = vmatprep.subr.bf16.mxu0 0
        %876 = vmatpush1.bf16.msra.mxu0 %v839
        %877 = vmatprep.subr.bf16.mxu0 0
        %878 = vmatpush1.bf16.msra.mxu0 %v840
        %879 = vmatprep.subr.bf16.mxu0 0
        %880 = vmatpush1.bf16.msra.mxu0 %v841
        %881 = vmatprep.subr.bf16.mxu0 0
        %882 = vmatpush1.bf16.msra.mxu0 %v842
        %883 = vmatprep.subr.bf16.mxu0 0
        %884 = vmatpush1.bf16.msra.mxu0 %v843
        %885 = vmatprep.subr.bf16.mxu0 0
        %886 = vmatpush1.bf16.msra.mxu0 %v844
        %887 = vmatprep.subr.bf16.mxu0 0
        %888 = vmatpush1.bf16.msra.mxu0 %v845
        %889 = vmatprep.subr.bf16.mxu0 0
        %890 = vmatpush1.bf16.msra.mxu0 %v846
        %891 = vmatprep.subr.bf16.mxu0 0
        %892 = vmatpush1.bf16.msra.mxu0 %v847
        %893 = vmatprep.subr.bf16.mxu0 0
        %894 = vmatpush1.bf16.msra.mxu0 %v848
        %895 = vmatprep.subr.bf16.mxu0 0
        %896 = vmatpush1.bf16.msra.mxu0 %v849
        %897 = vmatprep.subr.bf16.mxu0 0
        %898 = vmatpush1.bf16.msra.mxu0 %v850
        %899 = vmatprep.mubr.bf16.mxu0 %v737
        %900 = vmatmul.mubr.bf16.gmra.mrb[0].mxu0 %v736
        %v901 = vpop.f32.mrb[0].mxu0
        %v902 = vadd.f32 %v770, %v901
        %v903 = vpop.f32.mrb[0].mxu0
        %v904 = vpop.f32.mrb[0].mxu0
        %v905 = vpop.f32.mrb[0].mxu0
        %906 = vdwg.mxu0
        %907 = vst [vmem:[%s285] sm:$0x1] %v902
        %s908 = sand.u32 %s182, 1
        %s909 = scalar_lea.sflag [#allocation4], %s908
        %s910 = sand.u32 %s182, 1
        %s911 = scalar_lea.vmem [#allocation5], %s910
        // Predicated region
        $region53: #{tpu_custom_call.1} parent=47 // pred_check
          %p912 = pneg %p192
        $region54: #{tpu_custom_call.1} parent=47 // pred_check_branch
          %914 = sbr.rel (%p912) target = $region56
        $region55: #{tpu_custom_call.1} parent=47 // pred_region
          %s916 = ssub.s32 16, 16
          %917 = vsyncadd %s909, %s916
          %s918 = smul.addr %s22, 16
          %s919 = scalar_lea.hbm %s7, %s918
          %s921 = sshll.u32 %s911, 4
          %s922 = int_to_ptr.vmem [resolvable:$true] %s921
          %924 = dma.vmem_to_hbm [thread:$0]  %s922, 16, %s919, %s909
        $region56: #{tpu_custom_call.1} parent=47 // pred_fallthru
          _
      $region48: #{tpu_custom_call.1} parent=5 // pred_fallthru
        _
      %p925 = scmp.le.s32.totalorder 2, %s17
      // Predicated region
      $region57: #{tpu_custom_call.1} parent=5 // pred_check
        %p926 = pneg %p925
      $region58: #{tpu_custom_call.1} parent=5 // pred_check_branch
        %928 = sbr.rel (%p926) target = $region60
      $region59: #{tpu_custom_call.1} parent=5 // pred_region
        %s929 = ssub.s32 %s17, 2
        // Predicated region
        $region61: #{tpu_custom_call.1} parent=59 // pred_check
          %p930 = pneg %p198
        $region62: #{tpu_custom_call.1} parent=59 // pred_check_branch
          %932 = sbr.rel (%p930) target = $region64
        $region63: #{tpu_custom_call.1} parent=59 // pred_region
          %s933 = sand.u32 %s183, 1
          %s934 = scalar_lea.sflag [#allocation4], %s933
          %s935 = sand.u32 %s183, 1
          %s936 = scalar_lea.vmem [#allocation5], %s935
          %937 = dma.done %s934, 16
        $region64: #{tpu_custom_call.1} parent=59 // pred_fallthru
          _
      $region60: #{tpu_custom_call.1} parent=5 // pred_fallthru
        _
    $region6: #{tpu_custom_call.1} parent=1 // loop_footer
      %s21 = sadd.s32 1, %s17
    $region7: #{tpu_custom_call.1} parent=1 // loop_footer_branch
      %16 = sbr.rel target = $region3
    $region8: #{tpu_custom_call.1} parent=1 // loop_exit
      _
    %938 = vsyncpa [#allocation3], 1
    %s939 = scalar_lea.sflag [#allocation3], 1
    %940 = vsyncpa %s939, 1
    %941 = vsyncpa [#allocation4], 1
    %s942 = scalar_lea.sflag [#allocation4], 1
    %943 = vsyncpa %s942, 1

</llo_original>
